<compile_context>
chip_gen: v5e
topology: v5e:2x2
jax: 0.10.0
libtpu: 0.0.40
codegen_flags: <defaults>
</compile_context>

<pallas_src>
import jax
import jax.numpy as jnp
from jax.experimental import pallas as pl
from jax.experimental.pallas import tpu as pltpu

B, CIN, H, W = 2, 4, 16, 16       # input:  NCHW = (2, 4, 16, 16)
COUT = 32                         # backbone conv output channels
HID = 64                          # head hidden dim
PROJ = 32                         # head projection dim
KH = KW = 3                       # conv kernel size
HW = H * W
K_IM2COL = KH * KW * CIN          # 36


# --------------------------- fused forward kernel ---------------------------
def fused_kernel(cols_ref, cw_ref, cb_ref, pool_ref,
                 w1_ref, b1_ref, w2_ref, b2_ref, o_ref):
    # cols_ref: (B*H*W, KH*KW*CIN)   im2col'd input (built in the wrapper)
    # cw_ref  : (KH*KW*CIN, COUT)    conv weights as an im2col matrix
    # cb_ref  : (1, COUT)            conv bias
    # pool_ref: (B, B*H*W)           avg-pool matrix (1/(H*W) folded in)
    # w1/b1   : (COUT, HID), (1, HID)
    # w2/b2   : (HID, PROJ), (1, PROJ)
    # o_ref   : (B, PROJ)

    # ---- backbone: conv as one (512, 36) x (36, 32) MXU pass + ReLU ----
    conv = jnp.dot(cols_ref[...], cw_ref[...],
                   preferred_element_type=jnp.float32)        # (B*H*W, COUT)
    conv = jnp.maximum(conv + cb_ref[...], 0.0)

    # ---- global average pool as a second MXU pass (scale pre-folded) ----
    feat = jnp.dot(pool_ref[...], conv,
                   preferred_element_type=jnp.float32)        # (B, COUT)

    # ---- head: Linear -> ReLU -> Linear (projection MLP) ----
    h = jnp.dot(feat, w1_ref[...], preferred_element_type=jnp.float32)
    h = jnp.maximum(h + b1_ref[...], 0.0)                     # (B, HID)
    z = jnp.dot(h, w2_ref[...], preferred_element_type=jnp.float32)
    o_ref[...] = z + b2_ref[...]                              # (B, PROJ)


# --------------------------------- wrapper ----------------------------------
@jax.jit
def contrastive_net_forward(x_nchw, params):
    # ContrastiveNet.forward: x = backbone(x); x = head(x)  — one fused kernel.
    # Layout glue (NCHW->NHWC, pad, im2col, pool matrix) stays in the wrapper:
    # a few tiny fused XLA ops, far cheaper than the in-kernel relayouts they
    # replace.
    x_nhwc = jnp.transpose(x_nchw, (0, 2, 3, 1))              # (B, H, W, CIN)
    xp = jnp.pad(x_nhwc, ((0, 0), (1, 1), (1, 1), (0, 0)))    # (B, H+2, W+2, CIN)

    # im2col: tap order (kh-major, kw, cin-minor) MUST match the row-major
    # reshape of conv_w below — keep these two in sync.
    taps = [xp[:, kh:kh + H, kw:kw + W, :]
            for kh in range(KH) for kw in range(KW)]
    cols = jnp.concatenate(taps, axis=-1).reshape(B * HW, K_IM2COL)

    # (KH, KW, CIN, COUT) -> (KH*KW*CIN, COUT): contiguous reshape (free).
    cw_mat = params["conv_w"].reshape(K_IM2COL, COUT)

    # Average-pool matrix: row b has 1/(H*W) over that batch's H*W rows.
    pool = jnp.kron(jnp.eye(B, dtype=jnp.float32),
                    jnp.full((1, HW), 1.0 / HW, jnp.float32))  # (B, B*H*W)

    vmem = pl.BlockSpec(memory_space=pltpu.MemorySpace.VMEM)
    return pl.pallas_call(
        fused_kernel,
        out_shape=jax.ShapeDtypeStruct((B, PROJ), jnp.float32),
        in_specs=[vmem] * 8,
        out_specs=vmem,
        # TODO(synk): at training batch sizes, add a grid axis over B*H row
        # blocks marked "parallel" (dual TensorCores on v7x, 64 MiB VMEM) and
        # cast MXU operands to bf16; irrelevant at B=2.
    )(cols, cw_mat, params["conv_b"], pool,
      params["w1"], params["b1"], params["w2"], params["b2"])


# ------------------------- pure-JAX reference (check) -----------------------
def reference_forward(x_nchw, params):
    x = jnp.transpose(x_nchw, (0, 2, 3, 1))
    xp = jnp.pad(x, ((0, 0), (1, 1), (1, 1), (0, 0)))
    acc = jnp.zeros((B, H, W, COUT), jnp.float32)
    for kh in range(KH):
        for kw in range(KW):
            acc = acc + jnp.einsum("bhwc,co->bhwo",
                                   xp[:, kh:kh + H, kw:kw + W, :],
                                   params["conv_w"][kh, kw])
    acc = jnp.maximum(acc + params["conv_b"][0], 0.0)
    feat = jnp.mean(acc, axis=(1, 2))
    h = jnp.maximum(feat @ params["w1"] + params["b1"], 0.0)
    return h @ params["w2"] + params["b2"]


if __name__ == "__main__":
    key = jax.random.PRNGKey(0)
    kx, kcw, kcb, kw1, kb1, kw2, kb2 = jax.random.split(key, 7)

    x = jax.random.normal(kx, (B, CIN, H, W), jnp.float32)   # NCHW like PyTorch

    params = {
        "conv_w": 0.1 * jax.random.normal(kcw, (KH, KW, CIN, COUT), jnp.float32),
        "conv_b": 0.1 * jax.random.normal(kcb, (1, COUT), jnp.float32),
        "w1": 0.1 * jax.random.normal(kw1, (COUT, HID), jnp.float32),
        "b1": 0.1 * jax.random.normal(kb1, (1, HID), jnp.float32),
        "w2": 0.1 * jax.random.normal(kw2, (HID, PROJ), jnp.float32),
        "b2": 0.1 * jax.random.normal(kb2, (1, PROJ), jnp.float32),
    }

    out = contrastive_net_forward(x, params)
    out = jax.block_until_ready(out)

    ref = reference_forward(x, params)
    assert out.shape == (B, PROJ), out.shape
    assert jnp.allclose(out, ref, atol=1e-4, rtol=1e-4), "mismatch vs reference"

    print("KERNEL_OK")
</pallas_src>

<mosaic_0001>
module attributes {stable_mosaic.version = 11 : i64} {
  func.func @fused_kernel(%arg0: memref<512x36xf32, #tpu.memory_space<vmem>>, %arg1: memref<36x32xf32, #tpu.memory_space<vmem>>, %arg2: memref<1x32xf32, #tpu.memory_space<vmem>>, %arg3: memref<2x512xf32, #tpu.memory_space<vmem>>, %arg4: memref<32x64xf32, #tpu.memory_space<vmem>>, %arg5: memref<1x64xf32, #tpu.memory_space<vmem>>, %arg6: memref<64x32xf32, #tpu.memory_space<vmem>>, %arg7: memref<1x32xf32, #tpu.memory_space<vmem>>, %arg8: memref<2x32xf32, #tpu.memory_space<vmem>>) attributes {dimension_semantics = [], scalar_prefetch = 0 : i64, scratch_operands = 0 : i64, tpu.core_type = #tpu.core_type<tc>} {
    %c0 = arith.constant 0 : index
    %c0_0 = arith.constant 0 : index
    %0 = vector.load %arg0[%c0, %c0_0] : memref<512x36xf32, #tpu.memory_space<vmem>>, vector<512x36xf32>
    %c0_1 = arith.constant 0 : index
    %c0_2 = arith.constant 0 : index
    %1 = vector.load %arg1[%c0_1, %c0_2] : memref<36x32xf32, #tpu.memory_space<vmem>>, vector<36x32xf32>
    %cst = arith.constant dense<0.000000e+00> : vector<512x32xf32>
    %2 = tpu.matmul %0, %1, %cst {dimension_numbers = #tpu.dot_dimension_numbers<[1], [0], [0], [1], [0, 0, 1, 1], [], []>} : vector<512x36xf32>, vector<36x32xf32>, vector<512x32xf32> -> vector<512x32xf32>
    %c0_3 = arith.constant 0 : index
    %c0_4 = arith.constant 0 : index
    %3 = vector.load %arg2[%c0_3, %c0_4] : memref<1x32xf32, #tpu.memory_space<vmem>>, vector<1x32xf32>
    %4 = vector.broadcast %3 : vector<1x32xf32> to vector<512x32xf32>
    %5 = arith.addf %2, %4 : vector<512x32xf32>
    %cst_5 = arith.constant 0.000000e+00 : f32
    %6 = vector.broadcast %cst_5 : f32 to vector<512x32xf32>
    %7 = arith.maximumf %5, %6 : vector<512x32xf32>
    %c0_6 = arith.constant 0 : index
    %c0_7 = arith.constant 0 : index
    %8 = vector.load %arg3[%c0_6, %c0_7] : memref<2x512xf32, #tpu.memory_space<vmem>>, vector<2x512xf32>
    %cst_8 = arith.constant dense<0.000000e+00> : vector<2x32xf32>
    %9 = tpu.matmul %8, %7, %cst_8 {dimension_numbers = #tpu.dot_dimension_numbers<[1], [0], [0], [1], [0, 0, 1, 1], [], []>} : vector<2x512xf32>, vector<512x32xf32>, vector<2x32xf32> -> vector<2x32xf32>
    %c0_9 = arith.constant 0 : index
    %c0_10 = arith.constant 0 : index
    %10 = vector.load %arg4[%c0_9, %c0_10] : memref<32x64xf32, #tpu.memory_space<vmem>>, vector<32x64xf32>
    %cst_11 = arith.constant dense<0.000000e+00> : vector<2x64xf32>
    %11 = tpu.matmul %9, %10, %cst_11 {dimension_numbers = #tpu.dot_dimension_numbers<[1], [0], [0], [1], [0, 0, 1, 1], [], []>} : vector<2x32xf32>, vector<32x64xf32>, vector<2x64xf32> -> vector<2x64xf32>
    %c0_12 = arith.constant 0 : index
    %c0_13 = arith.constant 0 : index
    %12 = vector.load %arg5[%c0_12, %c0_13] : memref<1x64xf32, #tpu.memory_space<vmem>>, vector<1x64xf32>
    %13 = vector.broadcast %12 : vector<1x64xf32> to vector<2x64xf32>
    %14 = arith.addf %11, %13 : vector<2x64xf32>
    %cst_14 = arith.constant 0.000000e+00 : f32
    %15 = vector.broadcast %cst_14 : f32 to vector<2x64xf32>
    %16 = arith.maximumf %14, %15 : vector<2x64xf32>
    %c0_15 = arith.constant 0 : index
    %c0_16 = arith.constant 0 : index
    %17 = vector.load %arg6[%c0_15, %c0_16] : memref<64x32xf32, #tpu.memory_space<vmem>>, vector<64x32xf32>
    %cst_17 = arith.constant dense<0.000000e+00> : vector<2x32xf32>
    %18 = tpu.matmul %16, %17, %cst_17 {dimension_numbers = #tpu.dot_dimension_numbers<[1], [0], [0], [1], [0, 0, 1, 1], [], []>} : vector<2x64xf32>, vector<64x32xf32>, vector<2x32xf32> -> vector<2x32xf32>
    %c0_18 = arith.constant 0 : index
    %c0_19 = arith.constant 0 : index
    %19 = vector.load %arg7[%c0_18, %c0_19] : memref<1x32xf32, #tpu.memory_space<vmem>>, vector<1x32xf32>
    %20 = vector.broadcast %19 : vector<1x32xf32> to vector<2x32xf32>
    %21 = arith.addf %18, %20 : vector<2x32xf32>
    %c0_20 = arith.constant 0 : index
    %c0_21 = arith.constant 0 : index
    %22 = vector.load %arg8[%c0_20, %c0_21] : memref<2x32xf32, #tpu.memory_space<vmem>>, vector<2x32xf32>
    tpu.vector_store %arg8[%c0_20, %c0_21], %21 {strides = array<i32>} : memref<2x32xf32, #tpu.memory_space<vmem>>, vector<2x32xf32>,
    return
  }
}

</mosaic_0001>

<llo_original>
// kernel: contrastive_net_forward.1
$region0: #{contrastive_net_forward.1}
  #allocation0 [shape = 'u32[]', space=smem, size = 0x4, offset = 0x4, fixed_abs, tag = 'smem constant byte address 0x4 - core index']
  #allocation1 [shape = 'u32[72,128]{1,0:T(1,128)}', space=vmem, size = 0x9000, scoped, tag = 'internal scratch']
  %s0 = inlined_call_operand.vmem [shape: f32[512,36], index: 0, kind: input, shape index: {}]
  %s1 = inlined_call_operand.vmem [shape: f32[36,32], index: 1, kind: input, shape index: {}]
  %s2 = inlined_call_operand.vmem [shape: f32[1,32], index: 2, kind: input, shape index: {}]
  %s3 = inlined_call_operand.vmem [shape: f32[2,512], index: 3, kind: input, shape index: {}]
  %s4 = inlined_call_operand.vmem [shape: f32[32,64], index: 4, kind: input, shape index: {}]
  %s5 = inlined_call_operand.vmem [shape: f32[1,64], index: 5, kind: input, shape index: {}]
  %s6 = inlined_call_operand.vmem [shape: f32[64,32], index: 6, kind: input, shape index: {}]
  %s7 = inlined_call_operand.vmem [shape: f32[1,32], index: 7, kind: input, shape index: {}]
  %s8 = inlined_call_operand.hbm [shape: f32[2,32], index: 8, kind: output, shape index: {}]
  %s9 = sld [smem:[#allocation0]]
  $region42: #{contrastive_net_forward.1} parent=0
    _
  %s11 = ssub.s32 1, %s9
  %s12 = scalar_select 0, %s11, %s9
  $region1: #{contrastive_net_forward.1} parent=0
    #allocation2 [shape = 'u8[1024]{0}', space=vmem, size = 0x400, scoped, tag = 'output window, operand 0, single buffered']
    #allocation3 [shape = 's32[1]{0}', space=sflag, size = 0x4, scoped, tag = 'scoped memory for contrastive_net_forward.1']
    %13 = vsyncpa [#allocation3], 0
    // Predicated region
    $region2: #{contrastive_net_forward.1} parent=1 // pred_check
      _
    $region3: #{contrastive_net_forward.1} parent=1 // pred_check_branch
      %15 = sbr.rel (0) target = $region5
    $region4: #{contrastive_net_forward.1} parent=1 // pred_region
      _
    $region5: #{contrastive_net_forward.1} parent=1 // pred_fallthru
      _
    // Predicated region
    $region6: #{contrastive_net_forward.1} parent=1 // pred_check
      _
    $region7: #{contrastive_net_forward.1} parent=1 // pred_check_branch
      %17 = sbr.rel (0) target = $region9
    $region8: #{contrastive_net_forward.1} parent=1 // pred_region
      _
    $region9: #{contrastive_net_forward.1} parent=1 // pred_fallthru
      _
    // Predicated region
    $region10: #{contrastive_net_forward.1} parent=1 // pred_check
      _
    $region11: #{contrastive_net_forward.1} parent=1 // pred_check_branch
      %19 = sbr.rel (0) target = $region13
    $region12: #{contrastive_net_forward.1} parent=1 // pred_region
      _
    $region13: #{contrastive_net_forward.1} parent=1 // pred_fallthru
      _
    // Predicated region
    $region14: #{contrastive_net_forward.1} parent=1 // pred_check
      _
    $region15: #{contrastive_net_forward.1} parent=1 // pred_check_branch
      %21 = sbr.rel (0) target = $region17
    $region16: #{contrastive_net_forward.1} parent=1 // pred_region
      _
    $region17: #{contrastive_net_forward.1} parent=1 // pred_fallthru
      _
    // Predicated region
    $region18: #{contrastive_net_forward.1} parent=1 // pred_check
      _
    $region19: #{contrastive_net_forward.1} parent=1 // pred_check_branch
      %23 = sbr.rel (0) target = $region21
    $region20: #{contrastive_net_forward.1} parent=1 // pred_region
      _
    $region21: #{contrastive_net_forward.1} parent=1 // pred_fallthru
      _
    // Predicated region
    $region22: #{contrastive_net_forward.1} parent=1 // pred_check
      _
    $region23: #{contrastive_net_forward.1} parent=1 // pred_check_branch
      %25 = sbr.rel (0) target = $region25
    $region24: #{contrastive_net_forward.1} parent=1 // pred_region
      _
    $region25: #{contrastive_net_forward.1} parent=1 // pred_fallthru
      _
    // Predicated region
    $region26: #{contrastive_net_forward.1} parent=1 // pred_check
      _
    $region27: #{contrastive_net_forward.1} parent=1 // pred_check_branch
      %27 = sbr.rel (0) target = $region29
    $region28: #{contrastive_net_forward.1} parent=1 // pred_region
      _
    $region29: #{contrastive_net_forward.1} parent=1 // pred_fallthru
      _
    // Predicated region
    $region30: #{contrastive_net_forward.1} parent=1 // pred_check
      _
    $region31: #{contrastive_net_forward.1} parent=1 // pred_check_branch
      %29 = sbr.rel (0) target = $region33
    $region32: #{contrastive_net_forward.1} parent=1 // pred_region
      _
    $region33: #{contrastive_net_forward.1} parent=1 // pred_fallthru
      _
    %v30 = vld [vmem:[%s0] sm:$0xff]
    %v31 = vld [vmem:[%s0 + $0x8] sm:$0xff]
    %v32 = vld [vmem:[%s0 + $0x10] sm:$0xff]
    %v33 = vld [vmem:[%s0 + $0x18] sm:$0xff]
    %v34 = vld [vmem:[%s0 + $0x20] sm:$0xff]
    %v35 = vld [vmem:[%s0 + $0x28] sm:$0xff]
    %v36 = vld [vmem:[%s0 + $0x30] sm:$0xff]
    %v37 = vld [vmem:[%s0 + $0x38] sm:$0xff]
    %v38 = vld [vmem:[%s0 + $0x40] sm:$0xff]
    %v39 = vld [vmem:[%s0 + $0x48] sm:$0xff]
    %v40 = vld [vmem:[%s0 + $0x50] sm:$0xff]
    %v41 = vld [vmem:[%s0 + $0x58] sm:$0xff]
    %v42 = vld [vmem:[%s0 + $0x60] sm:$0xff]
    %v43 = vld [vmem:[%s0 + $0x68] sm:$0xff]
    %v44 = vld [vmem:[%s0 + $0x70] sm:$0xff]
    %v45 = vld [vmem:[%s0 + $0x78] sm:$0xff]
    %v46 = vld [vmem:[%s0 + $0x80] sm:$0xff]
    %v47 = vld [vmem:[%s0 + $0x88] sm:$0xff]
    %v48 = vld [vmem:[%s0 + $0x90] sm:$0xff]
    %v49 = vld [vmem:[%s0 + $0x98] sm:$0xff]
    %v50 = vld [vmem:[%s0 + $0xa0] sm:$0xff]
    %v51 = vld [vmem:[%s0 + $0xa8] sm:$0xff]
    %v52 = vld [vmem:[%s0 + $0xb0] sm:$0xff]
    %v53 = vld [vmem:[%s0 + $0xb8] sm:$0xff]
    %v54 = vld [vmem:[%s0 + $0xc0] sm:$0xff]
    %v55 = vld [vmem:[%s0 + $0xc8] sm:$0xff]
    %v56 = vld [vmem:[%s0 + $0xd0] sm:$0xff]
    %v57 = vld [vmem:[%s0 + $0xd8] sm:$0xff]
    %v58 = vld [vmem:[%s0 + $0xe0] sm:$0xff]
    %v59 = vld [vmem:[%s0 + $0xe8] sm:$0xff]
    %v60 = vld [vmem:[%s0 + $0xf0] sm:$0xff]
    %v61 = vld [vmem:[%s0 + $0xf8] sm:$0xff]
    %v62 = vld [vmem:[%s0 + $0x100] sm:$0xff]
    %v63 = vld [vmem:[%s0 + $0x108] sm:$0xff]
    %v64 = vld [vmem:[%s0 + $0x110] sm:$0xff]
    %v65 = vld [vmem:[%s0 + $0x118] sm:$0xff]
    %v66 = vld [vmem:[%s0 + $0x120] sm:$0xff]
    %v67 = vld [vmem:[%s0 + $0x128] sm:$0xff]
    %v68 = vld [vmem:[%s0 + $0x130] sm:$0xff]
    %v69 = vld [vmem:[%s0 + $0x138] sm:$0xff]
    %v70 = vld [vmem:[%s0 + $0x140] sm:$0xff]
    %v71 = vld [vmem:[%s0 + $0x148] sm:$0xff]
    %v72 = vld [vmem:[%s0 + $0x150] sm:$0xff]
    %v73 = vld [vmem:[%s0 + $0x158] sm:$0xff]
    %v74 = vld [vmem:[%s0 + $0x160] sm:$0xff]
    %v75 = vld [vmem:[%s0 + $0x168] sm:$0xff]
    %v76 = vld [vmem:[%s0 + $0x170] sm:$0xff]
    %v77 = vld [vmem:[%s0 + $0x178] sm:$0xff]
    %v78 = vld [vmem:[%s0 + $0x180] sm:$0xff]
    %v79 = vld [vmem:[%s0 + $0x188] sm:$0xff]
    %v80 = vld [vmem:[%s0 + $0x190] sm:$0xff]
    %v81 = vld [vmem:[%s0 + $0x198] sm:$0xff]
    %v82 = vld [vmem:[%s0 + $0x1a0] sm:$0xff]
    %v83 = vld [vmem:[%s0 + $0x1a8] sm:$0xff]
    %v84 = vld [vmem:[%s0 + $0x1b0] sm:$0xff]
    %v85 = vld [vmem:[%s0 + $0x1b8] sm:$0xff]
    %v86 = vld [vmem:[%s0 + $0x1c0] sm:$0xff]
    %v87 = vld [vmem:[%s0 + $0x1c8] sm:$0xff]
    %v88 = vld [vmem:[%s0 + $0x1d0] sm:$0xff]
    %v89 = vld [vmem:[%s0 + $0x1d8] sm:$0xff]
    %v90 = vld [vmem:[%s0 + $0x1e0] sm:$0xff]
    %v91 = vld [vmem:[%s0 + $0x1e8] sm:$0xff]
    %v92 = vld [vmem:[%s0 + $0x1f0] sm:$0xff]
    %v93 = vld [vmem:[%s0 + $0x1f8] sm:$0xff]
    %v94 = vld [vmem:[%s1] sm:$0xff]
    %v95 = vld [vmem:[%s1 + $0x8] sm:$0xff]
    %v96 = vld [vmem:[%s1 + $0x10] sm:$0xff]
    %v97 = vld [vmem:[%s1 + $0x18] sm:$0xff]
    %v98 = vld [vmem:[%s1 + $0x20] sm:$0xf]
    %v99 = vld [vmem:[%s2] sm:$0x1]
    %v101 = vperm.slane %v99, 0
    %vm103 = vcmask 293888
    %v105 = vsel %vm103, %v30, 0
    %v108 = vsel %vm103, %v31, 0
    %v111 = vsel %vm103, %v32, 0
    %v114 = vsel %vm103, %v33, 0
    %v117 = vsel %vm103, %v34, 0
    %v120 = vsel %vm103, %v35, 0
    %v123 = vsel %vm103, %v36, 0
    %v126 = vsel %vm103, %v37, 0
    %v129 = vsel %vm103, %v38, 0
    %v132 = vsel %vm103, %v39, 0
    %v135 = vsel %vm103, %v40, 0
    %v138 = vsel %vm103, %v41, 0
    %v141 = vsel %vm103, %v42, 0
    %v144 = vsel %vm103, %v43, 0
    %v147 = vsel %vm103, %v44, 0
    %v150 = vsel %vm103, %v45, 0
    %v153 = vsel %vm103, %v46, 0
    %v156 = vsel %vm103, %v47, 0
    %v159 = vsel %vm103, %v48, 0
    %v162 = vsel %vm103, %v49, 0
    %v165 = vsel %vm103, %v50, 0
    %v168 = vsel %vm103, %v51, 0
    %v171 = vsel %vm103, %v52, 0
    %v174 = vsel %vm103, %v53, 0
    %v177 = vsel %vm103, %v54, 0
    %v180 = vsel %vm103, %v55, 0
    %v183 = vsel %vm103, %v56, 0
    %v186 = vsel %vm103, %v57, 0
    %v189 = vsel %vm103, %v58, 0
    %v192 = vsel %vm103, %v59, 0
    %v195 = vsel %vm103, %v60, 0
    %v198 = vsel %vm103, %v61, 0
    %v201 = vsel %vm103, %v62, 0
    %v204 = vsel %vm103, %v63, 0
    %v207 = vsel %vm103, %v64, 0
    %v210 = vsel %vm103, %v65, 0
    %v213 = vsel %vm103, %v66, 0
    %v216 = vsel %vm103, %v67, 0
    %v219 = vsel %vm103, %v68, 0
    %v222 = vsel %vm103, %v69, 0
    %v225 = vsel %vm103, %v70, 0
    %v228 = vsel %vm103, %v71, 0
    %v231 = vsel %vm103, %v72, 0
    %v234 = vsel %vm103, %v73, 0
    %v237 = vsel %vm103, %v74, 0
    %v240 = vsel %vm103, %v75, 0
    %v243 = vsel %vm103, %v76, 0
    %v246 = vsel %vm103, %v77, 0
    %v249 = vsel %vm103, %v78, 0
    %v252 = vsel %vm103, %v79, 0
    %v255 = vsel %vm103, %v80, 0
    %v258 = vsel %vm103, %v81, 0
    %v261 = vsel %vm103, %v82, 0
    %v264 = vsel %vm103, %v83, 0
    %v267 = vsel %vm103, %v84, 0
    %v270 = vsel %vm103, %v85, 0
    %v273 = vsel %vm103, %v86, 0
    %v276 = vsel %vm103, %v87, 0
    %v279 = vsel %vm103, %v88, 0
    %v282 = vsel %vm103, %v89, 0
    %v285 = vsel %vm103, %v90, 0
    %v288 = vsel %vm103, %v91, 0
    %v291 = vsel %vm103, %v92, 0
    %v294 = vsel %vm103, %v93, 0
    %vm296 = vcmask 1043456
    %v298 = vsel %vm296, %v98, 0
    %300 = vmatpush.msra.mxu0 0.0
    %301 = vmatpush.msra.mxu0 0.0
    %302 = vmatpush.msra.mxu0 0.0
    %303 = vmatpush.msra.mxu0 0.0
    %304 = vmatpush.msra.mxu0 0.0
    %305 = vmatpush.msra.mxu0 0.0
    %306 = vmatpush.msra.mxu0 0.0
    %307 = vmatpush.msra.mxu0 0.0
    %308 = vmatpush.msra.mxu0 0.0
    %309 = vmatpush.msra.mxu0 0.0
    %310 = vmatpush.msra.mxu0 0.0
    %311 = vmatpush.msra.mxu0 %v298
    %312 = vmatpush.msra.mxu0 %v97
    %313 = vmatpush.msra.mxu0 %v96
    %314 = vmatpush.msra.mxu0 %v95
    %315 = vmatpush.msra.mxu0 %v94
    %316 = vmatmul.f32.gmra.mxu0 %v105
    %v317 = vpop.f32.mrf.mxu0
    %v318 = vadd.f32 %v101, %v317
    %319 = vmatmul.f32.gmra.mxu0 %v108
    %v320 = vpop.f32.mrf.mxu0
    %v321 = vadd.f32 %v101, %v320
    %322 = vmatmul.f32.gmra.mxu0 %v111
    %v323 = vpop.f32.mrf.mxu0
    %v324 = vadd.f32 %v101, %v323
    %325 = vmatmul.f32.gmra.mxu0 %v114
    %v326 = vpop.f32.mrf.mxu0
    %v327 = vadd.f32 %v101, %v326
    %328 = vmatmul.f32.gmra.mxu0 %v117
    %v329 = vpop.f32.mrf.mxu0
    %v330 = vadd.f32 %v101, %v329
    %331 = vmatmul.f32.gmra.mxu0 %v120
    %v332 = vpop.f32.mrf.mxu0
    %v333 = vadd.f32 %v101, %v332
    %334 = vmatmul.f32.gmra.mxu0 %v123
    %v335 = vpop.f32.mrf.mxu0
    %v336 = vadd.f32 %v101, %v335
    %337 = vmatmul.f32.gmra.mxu0 %v126
    %v338 = vpop.f32.mrf.mxu0
    %v339 = vadd.f32 %v101, %v338
    %340 = vmatmul.f32.gmra.mxu0 %v129
    %v341 = vpop.f32.mrf.mxu0
    %v342 = vadd.f32 %v101, %v341
    %343 = vmatmul.f32.gmra.mxu0 %v132
    %v344 = vpop.f32.mrf.mxu0
    %v345 = vadd.f32 %v101, %v344
    %346 = vmatmul.f32.gmra.mxu0 %v135
    %v347 = vpop.f32.mrf.mxu0
    %v348 = vadd.f32 %v101, %v347
    %349 = vmatmul.f32.gmra.mxu0 %v138
    %v350 = vpop.f32.mrf.mxu0
    %v351 = vadd.f32 %v101, %v350
    %352 = vmatmul.f32.gmra.mxu0 %v141
    %v353 = vpop.f32.mrf.mxu0
    %v354 = vadd.f32 %v101, %v353
    %355 = vmatmul.f32.gmra.mxu0 %v144
    %v356 = vpop.f32.mrf.mxu0
    %v357 = vadd.f32 %v101, %v356
    %358 = vmatmul.f32.gmra.mxu0 %v147
    %v359 = vpop.f32.mrf.mxu0
    %v360 = vadd.f32 %v101, %v359
    %361 = vmatmul.f32.gmra.mxu0 %v150
    %v362 = vpop.f32.mrf.mxu0
    %v363 = vadd.f32 %v101, %v362
    %364 = vmatmul.f32.gmra.mxu0 %v153
    %v365 = vpop.f32.mrf.mxu0
    %v366 = vadd.f32 %v101, %v365
    %367 = vmatmul.f32.gmra.mxu0 %v156
    %v368 = vpop.f32.mrf.mxu0
    %v369 = vadd.f32 %v101, %v368
    %370 = vmatmul.f32.gmra.mxu0 %v159
    %v371 = vpop.f32.mrf.mxu0
    %v372 = vadd.f32 %v101, %v371
    %373 = vmatmul.f32.gmra.mxu0 %v162
    %v374 = vpop.f32.mrf.mxu0
    %v375 = vadd.f32 %v101, %v374
    %376 = vmatmul.f32.gmra.mxu0 %v165
    %v377 = vpop.f32.mrf.mxu0
    %v378 = vadd.f32 %v101, %v377
    %379 = vmatmul.f32.gmra.mxu0 %v168
    %v380 = vpop.f32.mrf.mxu0
    %v381 = vadd.f32 %v101, %v380
    %382 = vmatmul.f32.gmra.mxu0 %v171
    %v383 = vpop.f32.mrf.mxu0
    %v384 = vadd.f32 %v101, %v383
    %385 = vmatmul.f32.gmra.mxu0 %v174
    %v386 = vpop.f32.mrf.mxu0
    %v387 = vadd.f32 %v101, %v386
    %388 = vmatmul.f32.gmra.mxu0 %v177
    %v389 = vpop.f32.mrf.mxu0
    %v390 = vadd.f32 %v101, %v389
    %391 = vmatmul.f32.gmra.mxu0 %v180
    %v392 = vpop.f32.mrf.mxu0
    %v393 = vadd.f32 %v101, %v392
    %394 = vmatmul.f32.gmra.mxu0 %v183
    %v395 = vpop.f32.mrf.mxu0
    %v396 = vadd.f32 %v101, %v395
    %397 = vmatmul.f32.gmra.mxu0 %v186
    %v398 = vpop.f32.mrf.mxu0
    %v399 = vadd.f32 %v101, %v398
    %400 = vmatmul.f32.gmra.mxu0 %v189
    %v401 = vpop.f32.mrf.mxu0
    %v402 = vadd.f32 %v101, %v401
    %403 = vmatmul.f32.gmra.mxu0 %v192
    %v404 = vpop.f32.mrf.mxu0
    %v405 = vadd.f32 %v101, %v404
    %406 = vmatmul.f32.gmra.mxu0 %v195
    %v407 = vpop.f32.mrf.mxu0
    %v408 = vadd.f32 %v101, %v407
    %409 = vmatmul.f32.gmra.mxu0 %v198
    %v410 = vpop.f32.mrf.mxu0
    %v411 = vadd.f32 %v101, %v410
    %412 = vmatmul.f32.gmra.mxu0 %v201
    %v413 = vpop.f32.mrf.mxu0
    %v414 = vadd.f32 %v101, %v413
    %415 = vmatmul.f32.gmra.mxu0 %v204
    %v416 = vpop.f32.mrf.mxu0
    %v417 = vadd.f32 %v101, %v416
    %418 = vmatmul.f32.gmra.mxu0 %v207
    %v419 = vpop.f32.mrf.mxu0
    %v420 = vadd.f32 %v101, %v419
    %421 = vmatmul.f32.gmra.mxu0 %v210
    %v422 = vpop.f32.mrf.mxu0
    %v423 = vadd.f32 %v101, %v422
    %424 = vmatmul.f32.gmra.mxu0 %v213
    %v425 = vpop.f32.mrf.mxu0
    %v426 = vadd.f32 %v101, %v425
    %427 = vmatmul.f32.gmra.mxu0 %v216
    %v428 = vpop.f32.mrf.mxu0
    %v429 = vadd.f32 %v101, %v428
    %430 = vmatmul.f32.gmra.mxu0 %v219
    %v431 = vpop.f32.mrf.mxu0
    %v432 = vadd.f32 %v101, %v431
    %433 = vmatmul.f32.gmra.mxu0 %v222
    %v434 = vpop.f32.mrf.mxu0
    %v435 = vadd.f32 %v101, %v434
    %436 = vmatmul.f32.gmra.mxu0 %v225
    %v437 = vpop.f32.mrf.mxu0
    %v438 = vadd.f32 %v101, %v437
    %439 = vmatmul.f32.gmra.mxu0 %v228
    %v440 = vpop.f32.mrf.mxu0
    %v441 = vadd.f32 %v101, %v440
    %442 = vmatmul.f32.gmra.mxu0 %v231
    %v443 = vpop.f32.mrf.mxu0
    %v444 = vadd.f32 %v101, %v443
    %445 = vmatmul.f32.gmra.mxu0 %v234
    %v446 = vpop.f32.mrf.mxu0
    %v447 = vadd.f32 %v101, %v446
    %448 = vmatmul.f32.gmra.mxu0 %v237
    %v449 = vpop.f32.mrf.mxu0
    %v450 = vadd.f32 %v101, %v449
    %451 = vmatmul.f32.gmra.mxu0 %v240
    %v452 = vpop.f32.mrf.mxu0
    %v453 = vadd.f32 %v101, %v452
    %454 = vmatmul.f32.gmra.mxu0 %v243
    %v455 = vpop.f32.mrf.mxu0
    %v456 = vadd.f32 %v101, %v455
    %457 = vmatmul.f32.gmra.mxu0 %v246
    %v458 = vpop.f32.mrf.mxu0
    %v459 = vadd.f32 %v101, %v458
    %460 = vmatmul.f32.gmra.mxu0 %v249
    %v461 = vpop.f32.mrf.mxu0
    %v462 = vadd.f32 %v101, %v461
    %463 = vmatmul.f32.gmra.mxu0 %v252
    %v464 = vpop.f32.mrf.mxu0
    %v465 = vadd.f32 %v101, %v464
    %466 = vmatmul.f32.gmra.mxu0 %v255
    %v467 = vpop.f32.mrf.mxu0
    %v468 = vadd.f32 %v101, %v467
    %469 = vmatmul.f32.gmra.mxu0 %v258
    %v470 = vpop.f32.mrf.mxu0
    %v471 = vadd.f32 %v101, %v470
    %472 = vmatmul.f32.gmra.mxu0 %v261
    %v473 = vpop.f32.mrf.mxu0
    %v474 = vadd.f32 %v101, %v473
    %475 = vmatmul.f32.gmra.mxu0 %v264
    %v476 = vpop.f32.mrf.mxu0
    %v477 = vadd.f32 %v101, %v476
    %478 = vmatmul.f32.gmra.mxu0 %v267
    %v479 = vpop.f32.mrf.mxu0
    %v480 = vadd.f32 %v101, %v479
    %481 = vmatmul.f32.gmra.mxu0 %v270
    %v482 = vpop.f32.mrf.mxu0
    %v483 = vadd.f32 %v101, %v482
    %484 = vmatmul.f32.gmra.mxu0 %v273
    %v485 = vpop.f32.mrf.mxu0
    %v486 = vadd.f32 %v101, %v485
    %487 = vmatmul.f32.gmra.mxu0 %v276
    %v488 = vpop.f32.mrf.mxu0
    %v489 = vadd.f32 %v101, %v488
    %490 = vmatmul.f32.gmra.mxu0 %v279
    %v491 = vpop.f32.mrf.mxu0
    %v492 = vadd.f32 %v101, %v491
    %493 = vmatmul.f32.gmra.mxu0 %v282
    %v494 = vpop.f32.mrf.mxu0
    %v495 = vadd.f32 %v101, %v494
    %496 = vmatmul.f32.gmra.mxu0 %v285
    %v497 = vpop.f32.mrf.mxu0
    %v498 = vadd.f32 %v101, %v497
    %499 = vmatmul.f32.gmra.mxu0 %v288
    %v500 = vpop.f32.mrf.mxu0
    %v501 = vadd.f32 %v101, %v500
    %502 = vmatmul.f32.gmra.mxu0 %v291
    %v503 = vpop.f32.mrf.mxu0
    %v504 = vadd.f32 %v101, %v503
    %505 = vmatmul.f32.gmra.mxu0 %v294
    %v506 = vpop.f32.mrf.mxu0
    %v507 = vadd.f32 %v101, %v506
    %508 = vdwg.mxu0
    %v509 = vmax.f32 %v318, 0.0
    %v510 = vmax.f32 %v321, 0.0
    %v511 = vmax.f32 %v324, 0.0
    %v512 = vmax.f32 %v327, 0.0
    %v513 = vmax.f32 %v330, 0.0
    %v514 = vmax.f32 %v333, 0.0
    %v515 = vmax.f32 %v336, 0.0
    %v516 = vmax.f32 %v339, 0.0
    %v517 = vmax.f32 %v342, 0.0
    %v518 = vmax.f32 %v345, 0.0
    %v519 = vmax.f32 %v348, 0.0
    %v520 = vmax.f32 %v351, 0.0
    %v521 = vmax.f32 %v354, 0.0
    %v522 = vmax.f32 %v357, 0.0
    %v523 = vmax.f32 %v360, 0.0
    %v524 = vmax.f32 %v363, 0.0
    %v525 = vmax.f32 %v366, 0.0
    %v526 = vmax.f32 %v369, 0.0
    %v527 = vmax.f32 %v372, 0.0
    %v528 = vmax.f32 %v375, 0.0
    %v529 = vmax.f32 %v378, 0.0
    %v530 = vmax.f32 %v381, 0.0
    %v531 = vmax.f32 %v384, 0.0
    %v532 = vmax.f32 %v387, 0.0
    %v533 = vmax.f32 %v390, 0.0
    %v534 = vmax.f32 %v393, 0.0
    %v535 = vmax.f32 %v396, 0.0
    %v536 = vmax.f32 %v399, 0.0
    %v537 = vmax.f32 %v402, 0.0
    %v538 = vmax.f32 %v405, 0.0
    %v539 = vmax.f32 %v408, 0.0
    %v540 = vmax.f32 %v411, 0.0
    %v541 = vmax.f32 %v414, 0.0
    %v542 = vmax.f32 %v417, 0.0
    %v543 = vmax.f32 %v420, 0.0
    %v544 = vmax.f32 %v423, 0.0
    %v545 = vmax.f32 %v426, 0.0
    %v546 = vmax.f32 %v429, 0.0
    %v547 = vmax.f32 %v432, 0.0
    %v548 = vmax.f32 %v435, 0.0
    %v549 = vmax.f32 %v438, 0.0
    %v550 = vmax.f32 %v441, 0.0
    %v551 = vmax.f32 %v444, 0.0
    %v552 = vmax.f32 %v447, 0.0
    %v553 = vmax.f32 %v450, 0.0
    %v554 = vmax.f32 %v453, 0.0
    %v555 = vmax.f32 %v456, 0.0
    %v556 = vmax.f32 %v459, 0.0
    %v557 = vmax.f32 %v462, 0.0
    %v558 = vmax.f32 %v465, 0.0
    %v559 = vmax.f32 %v468, 0.0
    %v560 = vmax.f32 %v471, 0.0
    %v561 = vmax.f32 %v474, 0.0
    %v562 = vmax.f32 %v477, 0.0
    %v563 = vmax.f32 %v480, 0.0
    %v564 = vmax.f32 %v483, 0.0
    %v565 = vmax.f32 %v486, 0.0
    %v566 = vmax.f32 %v489, 0.0
    %v567 = vmax.f32 %v492, 0.0
    %v568 = vmax.f32 %v495, 0.0
    %v569 = vmax.f32 %v498, 0.0
    %v570 = vmax.f32 %v501, 0.0
    %v571 = vmax.f32 %v504, 0.0
    %v572 = vmax.f32 %v507, 0.0
    %v573 = vld [vmem:[%s3] sm:$0xff]
    %575 = vst [vmem:[#allocation1] ss:$4 sm:$0xff] %v573
    %v576 = vld.sshfl [vmem:[#allocation1] sm:$0xff pattern:$0x73625140]
    %v577 = vld.sshfl [vmem:[#allocation1 + $0x8] sm:$0xff pattern:$0x73625140]
    %v578 = vld.sshfl [vmem:[#allocation1 + $0x10] sm:$0xff pattern:$0x73625140]
    %v579 = vld.sshfl [vmem:[#allocation1 + $0x18] sm:$0xff pattern:$0x73625140]
    %584 = vmatpush.msra.mxu0 %v524
    %585 = vmatpush.msra.mxu0 %v523
    %586 = vmatpush.msra.mxu0 %v522
    %587 = vmatpush.msra.mxu0 %v521
    %588 = vmatpush.msra.mxu0 %v520
    %589 = vmatpush.msra.mxu0 %v519
    %590 = vmatpush.msra.mxu0 %v518
    %591 = vmatpush.msra.mxu0 %v517
    %592 = vmatpush.msra.mxu0 %v516
    %593 = vmatpush.msra.mxu0 %v515
    %594 = vmatpush.msra.mxu0 %v514
    %595 = vmatpush.msra.mxu0 %v513
    %596 = vmatpush.msra.mxu0 %v512
    %597 = vmatpush.msra.mxu0 %v511
    %598 = vmatpush.msra.mxu0 %v510
    %599 = vmatpush.msra.mxu0 %v509
    %600 = vmatmul.f32.gmra.mxu0 %v576
    %v601 = vpop.f32.mrf.mxu0
    %v602 = vadd.f32 0.0, %v601
    %603 = vdwg.mxu0
    %604 = vmatpush.msra.mxu0 %v540
    %605 = vmatpush.msra.mxu0 %v539
    %606 = vmatpush.msra.mxu0 %v538
    %607 = vmatpush.msra.mxu0 %v537
    %608 = vmatpush.msra.mxu0 %v536
    %609 = vmatpush.msra.mxu0 %v535
    %610 = vmatpush.msra.mxu0 %v534
    %611 = vmatpush.msra.mxu0 %v533
    %612 = vmatpush.msra.mxu0 %v532
    %613 = vmatpush.msra.mxu0 %v531
    %614 = vmatpush.msra.mxu0 %v530
    %615 = vmatpush.msra.mxu0 %v529
    %616 = vmatpush.msra.mxu0 %v528
    %617 = vmatpush.msra.mxu0 %v527
    %618 = vmatpush.msra.mxu0 %v526
    %619 = vmatpush.msra.mxu0 %v525
    %620 = vmatmul.f32.gmra.mxu0 %v577
    %v621 = vpop.f32.mrf.mxu0
    %v622 = vadd.f32 %v602, %v621
    %623 = vdwg.mxu0
    %624 = vmatpush.msra.mxu0 %v556
    %625 = vmatpush.msra.mxu0 %v555
    %626 = vmatpush.msra.mxu0 %v554
    %627 = vmatpush.msra.mxu0 %v553
    %628 = vmatpush.msra.mxu0 %v552
    %629 = vmatpush.msra.mxu0 %v551
    %630 = vmatpush.msra.mxu0 %v550
    %631 = vmatpush.msra.mxu0 %v549
    %632 = vmatpush.msra.mxu0 %v548
    %633 = vmatpush.msra.mxu0 %v547
    %634 = vmatpush.msra.mxu0 %v546
    %635 = vmatpush.msra.mxu0 %v545
    %636 = vmatpush.msra.mxu0 %v544
    %637 = vmatpush.msra.mxu0 %v543
    %638 = vmatpush.msra.mxu0 %v542
    %639 = vmatpush.msra.mxu0 %v541
    %640 = vmatmul.f32.gmra.mxu0 %v578
    %v641 = vpop.f32.mrf.mxu0
    %v642 = vadd.f32 %v622, %v641
    %643 = vdwg.mxu0
    %644 = vmatpush.msra.mxu0 %v572
    %645 = vmatpush.msra.mxu0 %v571
    %646 = vmatpush.msra.mxu0 %v570
    %647 = vmatpush.msra.mxu0 %v569
    %648 = vmatpush.msra.mxu0 %v568
    %649 = vmatpush.msra.mxu0 %v567
    %650 = vmatpush.msra.mxu0 %v566
    %651 = vmatpush.msra.mxu0 %v565
    %652 = vmatpush.msra.mxu0 %v564
    %653 = vmatpush.msra.mxu0 %v563
    %654 = vmatpush.msra.mxu0 %v562
    %655 = vmatpush.msra.mxu0 %v561
    %656 = vmatpush.msra.mxu0 %v560
    %657 = vmatpush.msra.mxu0 %v559
    %658 = vmatpush.msra.mxu0 %v558
    %659 = vmatpush.msra.mxu0 %v557
    %660 = vmatmul.f32.gmra.mxu0 %v579
    %v661 = vpop.f32.mrf.mxu0
    %v662 = vadd.f32 %v642, %v661
    %663 = vdwg.mxu0
    %v664 = vld [vmem:[%s4] sm:$0xff]
    %v665 = vld [vmem:[%s4 + $0x8] sm:$0xff]
    %v666 = vld [vmem:[%s4 + $0x10] sm:$0xff]
    %v667 = vld [vmem:[%s4 + $0x18] sm:$0xff]
    %v668 = vld [vmem:[%s5] sm:$0x1]
    %v670 = vperm.slane %v668, 0
    %vm672 = vcmask 261120
    %v674 = vsel %vm672, %v662, 0
    %676 = vmatpush.msra.mxu0 0.0
    %677 = vmatpush.msra.mxu0 0.0
    %678 = vmatpush.msra.mxu0 0.0
    %679 = vmatpush.msra.mxu0 0.0
    %680 = vmatpush.msra.mxu0 0.0
    %681 = vmatpush.msra.mxu0 0.0
    %682 = vmatpush.msra.mxu0 0.0
    %683 = vmatpush.msra.mxu0 0.0
    %684 = vmatpush.msra.mxu0 0.0
    %685 = vmatpush.msra.mxu0 0.0
    %686 = vmatpush.msra.mxu0 0.0
    %687 = vmatpush.msra.mxu0 0.0
    %688 = vmatpush.msra.mxu0 %v667
    %689 = vmatpush.msra.mxu0 %v666
    %690 = vmatpush.msra.mxu0 %v665
    %691 = vmatpush.msra.mxu0 %v664
    %692 = vmatmul.f32.gmra.mxu0 %v674
    %v693 = vpop.f32.mrf.mxu0
    %v694 = vadd.f32 %v670, %v693
    %695 = vdwg.mxu0
    %v696 = vmax.f32 %v694, 0.0
    %v697 = vld [vmem:[%s6] sm:$0xff]
    %v698 = vld [vmem:[%s6 + $0x8] sm:$0xff]
    %v699 = vld [vmem:[%s6 + $0x10] sm:$0xff]
    %v700 = vld [vmem:[%s6 + $0x18] sm:$0xff]
    %v701 = vld [vmem:[%s6 + $0x20] sm:$0xff]
    %v702 = vld [vmem:[%s6 + $0x28] sm:$0xff]
    %v703 = vld [vmem:[%s6 + $0x30] sm:$0xff]
    %v704 = vld [vmem:[%s6 + $0x38] sm:$0xff]
    %v705 = vld [vmem:[%s7] sm:$0x1]
    %v707 = vperm.slane %v705, 0
    %vm709 = vcmask 523264
    %v711 = vsel %vm709, %v696, 0
    %713 = vmatpush.msra.mxu0 0.0
    %714 = vmatpush.msra.mxu0 0.0
    %715 = vmatpush.msra.mxu0 0.0
    %716 = vmatpush.msra.mxu0 0.0
    %717 = vmatpush.msra.mxu0 0.0
    %718 = vmatpush.msra.mxu0 0.0
    %719 = vmatpush.msra.mxu0 0.0
    %720 = vmatpush.msra.mxu0 0.0
    %721 = vmatpush.msra.mxu0 %v704
    %722 = vmatpush.msra.mxu0 %v703
    %723 = vmatpush.msra.mxu0 %v702
    %724 = vmatpush.msra.mxu0 %v701
    %725 = vmatpush.msra.mxu0 %v700
    %726 = vmatpush.msra.mxu0 %v699
    %727 = vmatpush.msra.mxu0 %v698
    %728 = vmatpush.msra.mxu0 %v697
    %729 = vmatmul.f32.gmra.mxu0 %v711
    %v730 = vpop.f32.mrf.mxu0
    %v731 = vadd.f32 %v707, %v730
    %732 = vdwg.mxu0
    %vm733 = vcmask 254976
    %734 = vst.msk [vmem:[#allocation2] sm:$0x3] %vm733, %v731
    // Predicated region
    $region34: #{contrastive_net_forward.1} parent=1 // pred_check
      _
    $region35: #{contrastive_net_forward.1} parent=1 // pred_check_branch
      %736 = sbr.rel (0) target = $region37
    $region36: #{contrastive_net_forward.1} parent=1 // pred_region
      %738 = vsyncadd [#allocation3], 0
      %s740 = sshll.u32 [#allocation2], 4
      %s741 = int_to_ptr.vmem [resolvable:$true] %s740
      %s742 = sshll.u32 %s8, 4
      %s743 = int_to_ptr.hbm [resolvable:$true] %s742
      %745 = dma.vmem_to_hbm [thread:$0]  %s741, 32, %s743, [#allocation3]
    $region37: #{contrastive_net_forward.1} parent=1 // pred_fallthru
      _
    // Predicated region
    $region38: #{contrastive_net_forward.1} parent=1 // pred_check
      _
    $region39: #{contrastive_net_forward.1} parent=1 // pred_check_branch
      %747 = sbr.rel (0) target = $region41
    $region40: #{contrastive_net_forward.1} parent=1 // pred_region
      %749 = dma.done [#allocation3], 32
    $region41: #{contrastive_net_forward.1} parent=1 // pred_fallthru
      _
    %750 = vsyncpa [#allocation3], 1

</llo_original>
